<compile_context>
chip_gen: v5e
topology: v5e:2x2
jax: 0.10.0
libtpu: 0.0.40
codegen_flags: <defaults>
</compile_context>

<pallas_src>
import functools

import jax
import jax.numpy as jnp
import numpy as np
from jax.experimental import pallas as pl
from jax.experimental.pallas import tpu as pltpu  # noqa: F401  (kept for TPU-specific extensions)

LN_EPS = 1e-5


def _layer_norm(x, gamma, beta):
    mu = jnp.mean(x, axis=-1, keepdims=True)
    var = jnp.mean((x - mu) ** 2, axis=-1, keepdims=True)
    return (x - mu) * jax.lax.rsqrt(var + LN_EPS) * gamma + beta


def mhab_kernel(q_ref, k_ref, mask_ref,
                wq_ref, wk_ref, wv_ref, bq_ref, bk_ref, bv_ref,
                wo_ref, bo_ref,
                g0_ref, be0_ref,
                wfc_ref, bfc_ref,
                g1_ref, be1_ref,
                out_ref,
                *, num_heads):
    B, Lq, E = q_ref.shape
    Lk = k_ref.shape[1]
    hd = E // num_heads
    scale = 1.0 / float(np.sqrt(hd))

    # Flatten batch*seq: projections / fc / layernorms run on (B*L, E).
    # (Leading-dim-only reshapes: no lane relayout.)
    Xq = q_ref[...].reshape(B * Lq, E)          # (Nq, E)
    Xk = k_ref[...].reshape(B * Lk, E)          # (Nk, E)

    # Full-width projections (weights pre-transposed host-side).  The 1/sqrt(hd)
    # attention scale is folded into the query projection once.
    qp = (jnp.dot(Xq, wq_ref[...], preferred_element_type=jnp.float32)
          + bq_ref[...]) * scale                # (Nq, E)
    kp = jnp.dot(Xk, wk_ref[...], preferred_element_type=jnp.float32) + bk_ref[...]
    vp = jnp.dot(Xk, wv_ref[...], preferred_element_type=jnp.float32) + bv_ref[...]

    kp3 = kp.reshape(B, Lk, E)

    # Per-head attention via lane masks: no lane slicing, no concatenation.
    attn = jnp.zeros((B * Lq, E), jnp.float32)
    for h in range(num_heads):                  # static, H = 4
        m = mask_ref[h]                         # (1, E) 0/1 lane mask for head h
        qh3 = (qp * m).reshape(B, Lq, E)
        vh3 = (vp * m).reshape(B, Lk, E)

        # Scores: off-head lanes are zeroed, so the full-E contraction equals
        # the per-head (hd-wide) contraction exactly.
        s = jnp.einsum("bqd,bkd->bqk", qh3, kp3,
                       preferred_element_type=jnp.float32)       # (B, Lq, Lk)
        s = s - jnp.max(s, axis=-1, keepdims=True)
        p = jnp.exp(s)
        # EUP approximate reciprocal instead of a VALU division.
        p = p * pl.reciprocal(jnp.sum(p, axis=-1, keepdims=True), approx=True)

        # Masked values drop this head's output straight into its lane group.
        attn = attn + jnp.einsum("bqk,bkd->bqd", p, vh3,
                                 preferred_element_type=jnp.float32
                                 ).reshape(B * Lq, E)

    # Output projection + residual
    O = (jnp.dot(attn, wo_ref[...], preferred_element_type=jnp.float32)
         + bo_ref[...] + Xq)

    # ln0
    O = _layer_norm(O, g0_ref[...], be0_ref[...])

    # fc_o (weight pre-transposed host-side) + relu + residual
    f = jnp.dot(O, wfc_ref[...], preferred_element_type=jnp.float32) + bfc_ref[...]
    O = O + jnp.maximum(f, 0.0)

    # ln1
    O = _layer_norm(O, g1_ref[...], be1_ref[...])

    out_ref[...] = O.reshape(B, Lq, E).astype(out_ref.dtype)


def multi_head_attention_block(Q, K, params, num_heads):
    B, Lq, E = Q.shape
    hd = E // num_heads

    # ---- Host-side (once): pre-transpose all weights so the kernel never
    # transposes, and build the per-head lane masks. ------------------------
    wq_t = params["w_q"].T                      # (E, E): X @ wq_t = q projection
    wk_t = params["w_k"].T
    wv_t = params["w_v"].T
    wo_t = params["w_out"].T                    # (E, E): attn @ wo_t = out proj
    wfc_t = params["w_fc"].T

    lane = jnp.arange(E)
    head_mask = (lane[None, :] // hd == jnp.arange(num_heads)[:, None])
    head_mask = head_mask.astype(jnp.float32).reshape(num_heads, 1, E)

    weight_args = [
        head_mask,
        wq_t, wk_t, wv_t,
        params["b_q"], params["b_k"], params["b_v"],
        wo_t, params["b_out"],
        params["g0"], params["beta0"],
        wfc_t, params["b_fc"],
        params["g1"], params["beta1"],
    ]

    kernel = functools.partial(mhab_kernel, num_heads=num_heads)

    # Single invocation: no grid, every operand is one full VMEM block
    # (total working set ~30 KiB, far under any VMEM limit).
    return pl.pallas_call(
        kernel,
        out_shape=jax.ShapeDtypeStruct((B, Lq, E), Q.dtype),
    )(Q, K, *weight_args)


def reference_block(Q, K, params, num_heads):
    """Pure-JAX reference matching PyTorch nn.MultiheadAttention semantics."""
    B, Lq, E = Q.shape
    Lk = K.shape[1]
    hd = E // num_heads
    scale = 1.0 / np.sqrt(hd)

    qp = Q @ params["w_q"].T + params["b_q"][0]
    kp = K @ params["w_k"].T + params["b_k"][0]
    vp = K @ params["w_v"].T + params["b_v"][0]

    qh = qp.reshape(B, Lq, num_heads, hd).transpose(0, 2, 1, 3)
    kh = kp.reshape(B, Lk, num_heads, hd).transpose(0, 2, 1, 3)
    vh = vp.reshape(B, Lk, num_heads, hd).transpose(0, 2, 1, 3)

    s = jnp.einsum("bhqd,bhkd->bhqk", qh, kh) * scale
    p = jax.nn.softmax(s, axis=-1)
    attn = jnp.einsum("bhqk,bhkd->bhqd", p, vh)
    attn = attn.transpose(0, 2, 1, 3).reshape(B, Lq, E)

    O = attn @ params["w_out"].T + params["b_out"][0]
    O = O + Q
    O = _layer_norm(O, params["g0"][0], params["beta0"][0])
    f = O @ params["w_fc"].T + params["b_fc"][0]
    O = O + jnp.maximum(f, 0.0)
    O = _layer_norm(O, params["g1"][0], params["beta1"][0])
    return O


def init_params(key, dim):
    ks = jax.random.split(key, 16)
    s = 0.1
    p = {
        "w_q": jax.random.normal(ks[0], (dim, dim), jnp.float32) * s,
        "w_k": jax.random.normal(ks[1], (dim, dim), jnp.float32) * s,
        "w_v": jax.random.normal(ks[2], (dim, dim), jnp.float32) * s,
        "b_q": jax.random.normal(ks[3], (1, dim), jnp.float32) * s,
        "b_k": jax.random.normal(ks[4], (1, dim), jnp.float32) * s,
        "b_v": jax.random.normal(ks[5], (1, dim), jnp.float32) * s,
        "w_out": jax.random.normal(ks[6], (dim, dim), jnp.float32) * s,
        "b_out": jax.random.normal(ks[7], (1, dim), jnp.float32) * s,
        "g0": 1.0 + jax.random.normal(ks[8], (1, dim), jnp.float32) * 0.01,
        "beta0": jax.random.normal(ks[9], (1, dim), jnp.float32) * 0.01,
        "w_fc": jax.random.normal(ks[10], (dim, dim), jnp.float32) * s,
        "b_fc": jax.random.normal(ks[11], (1, dim), jnp.float32) * s,
        "g1": 1.0 + jax.random.normal(ks[12], (1, dim), jnp.float32) * 0.01,
        "beta1": jax.random.normal(ks[13], (1, dim), jnp.float32) * 0.01,
    }
    return p


if __name__ == "__main__":
    # Small shapes consistent with the module: dim_Q = dim_K = dim_V = 32,
    # num_heads = 4, batch = 2, seq_q = 8, seq_k = 8.
    B, Lq, Lk, E, H = 2, 8, 8, 32, 4

    key = jax.random.PRNGKey(0)
    kq, kk, kp = jax.random.split(key, 3)
    Q = jax.random.normal(kq, (B, Lq, E), jnp.float32)
    K = jax.random.normal(kk, (B, Lk, E), jnp.float32)
    params = init_params(kp, E)

    out = multi_head_attention_block(Q, K, params, num_heads=H)
    out = jax.block_until_ready(out)

    ref = reference_block(Q, K, params, num_heads=H)
    # Slightly looser tolerance than exact math because the kernel uses the
    # EUP approximate reciprocal for the softmax normalization.
    np.testing.assert_allclose(np.asarray(out), np.asarray(ref),
                               rtol=5e-3, atol=5e-3)

    print("KERNEL_OK")
</pallas_src>

<mosaic_0001>
module attributes {stable_mosaic.version = 11 : i64} {
  func.func @mhab_kernel(%arg0: memref<2x8x32xf32, #tpu.memory_space<vmem>>, %arg1: memref<2x8x32xf32, #tpu.memory_space<vmem>>, %arg2: memref<4x1x32xf32, #tpu.memory_space<vmem>>, %arg3: memref<32x32xf32, #tpu.memory_space<vmem>>, %arg4: memref<32x32xf32, #tpu.memory_space<vmem>>, %arg5: memref<32x32xf32, #tpu.memory_space<vmem>>, %arg6: memref<1x32xf32, #tpu.memory_space<vmem>>, %arg7: memref<1x32xf32, #tpu.memory_space<vmem>>, %arg8: memref<1x32xf32, #tpu.memory_space<vmem>>, %arg9: memref<32x32xf32, #tpu.memory_space<vmem>>, %arg10: memref<1x32xf32, #tpu.memory_space<vmem>>, %arg11: memref<1x32xf32, #tpu.memory_space<vmem>>, %arg12: memref<1x32xf32, #tpu.memory_space<vmem>>, %arg13: memref<32x32xf32, #tpu.memory_space<vmem>>, %arg14: memref<1x32xf32, #tpu.memory_space<vmem>>, %arg15: memref<1x32xf32, #tpu.memory_space<vmem>>, %arg16: memref<1x32xf32, #tpu.memory_space<vmem>>, %arg17: memref<2x8x32xf32, #tpu.memory_space<vmem>>) attributes {dimension_semantics = [], scalar_prefetch = 0 : i64, scratch_operands = 0 : i64, tpu.core_type = #tpu.core_type<tc>} {
    %c0 = arith.constant 0 : index
    %c0_0 = arith.constant 0 : index
    %c0_1 = arith.constant 0 : index
    %0 = vector.load %arg0[%c0, %c0_0, %c0_1] : memref<2x8x32xf32, #tpu.memory_space<vmem>>, vector<2x8x32xf32>
    %1 = vector.shape_cast %0 : vector<2x8x32xf32> to vector<16x32xf32>
    %c0_2 = arith.constant 0 : index
    %c0_3 = arith.constant 0 : index
    %c0_4 = arith.constant 0 : index
    %2 = vector.load %arg1[%c0_2, %c0_3, %c0_4] : memref<2x8x32xf32, #tpu.memory_space<vmem>>, vector<2x8x32xf32>
    %3 = vector.shape_cast %2 : vector<2x8x32xf32> to vector<16x32xf32>
    %c0_5 = arith.constant 0 : index
    %c0_6 = arith.constant 0 : index
    %4 = vector.load %arg3[%c0_5, %c0_6] : memref<32x32xf32, #tpu.memory_space<vmem>>, vector<32x32xf32>
    %cst = arith.constant dense<0.000000e+00> : vector<16x32xf32>
    %5 = tpu.matmul %1, %4, %cst {dimension_numbers = #tpu.dot_dimension_numbers<[1], [0], [0], [1], [0, 0, 1, 1], [], []>} : vector<16x32xf32>, vector<32x32xf32>, vector<16x32xf32> -> vector<16x32xf32>
    %c0_7 = arith.constant 0 : index
    %c0_8 = arith.constant 0 : index
    %6 = vector.load %arg6[%c0_7, %c0_8] : memref<1x32xf32, #tpu.memory_space<vmem>>, vector<1x32xf32>
    %7 = vector.broadcast %6 : vector<1x32xf32> to vector<16x32xf32>
    %8 = arith.addf %5, %7 : vector<16x32xf32>
    %cst_9 = arith.constant 0.353553385 : f32
    %9 = vector.broadcast %cst_9 : f32 to vector<16x32xf32>
    %10 = arith.mulf %8, %9 : vector<16x32xf32>
    %c0_10 = arith.constant 0 : index
    %c0_11 = arith.constant 0 : index
    %11 = vector.load %arg4[%c0_10, %c0_11] : memref<32x32xf32, #tpu.memory_space<vmem>>, vector<32x32xf32>
    %cst_12 = arith.constant dense<0.000000e+00> : vector<16x32xf32>
    %12 = tpu.matmul %3, %11, %cst_12 {dimension_numbers = #tpu.dot_dimension_numbers<[1], [0], [0], [1], [0, 0, 1, 1], [], []>} : vector<16x32xf32>, vector<32x32xf32>, vector<16x32xf32> -> vector<16x32xf32>
    %c0_13 = arith.constant 0 : index
    %c0_14 = arith.constant 0 : index
    %13 = vector.load %arg7[%c0_13, %c0_14] : memref<1x32xf32, #tpu.memory_space<vmem>>, vector<1x32xf32>
    %14 = vector.broadcast %13 : vector<1x32xf32> to vector<16x32xf32>
    %15 = arith.addf %12, %14 : vector<16x32xf32>
    %c0_15 = arith.constant 0 : index
    %c0_16 = arith.constant 0 : index
    %16 = vector.load %arg5[%c0_15, %c0_16] : memref<32x32xf32, #tpu.memory_space<vmem>>, vector<32x32xf32>
    %cst_17 = arith.constant dense<0.000000e+00> : vector<16x32xf32>
    %17 = tpu.matmul %3, %16, %cst_17 {dimension_numbers = #tpu.dot_dimension_numbers<[1], [0], [0], [1], [0, 0, 1, 1], [], []>} : vector<16x32xf32>, vector<32x32xf32>, vector<16x32xf32> -> vector<16x32xf32>
    %c0_18 = arith.constant 0 : index
    %c0_19 = arith.constant 0 : index
    %18 = vector.load %arg8[%c0_18, %c0_19] : memref<1x32xf32, #tpu.memory_space<vmem>>, vector<1x32xf32>
    %19 = vector.broadcast %18 : vector<1x32xf32> to vector<16x32xf32>
    %20 = arith.addf %17, %19 : vector<16x32xf32>
    %21 = vector.shape_cast %15 : vector<16x32xf32> to vector<2x8x32xf32>
    %cst_20 = arith.constant 0.000000e+00 : f32
    %22 = vector.broadcast %cst_20 : f32 to vector<16x32xf32>
    %c0_21 = arith.constant 0 : index
    %c0_22 = arith.constant 0 : index
    %c0_23 = arith.constant 0 : index
    %23 = vector.load %arg2[%c0_21, %c0_22, %c0_23] : memref<4x1x32xf32, #tpu.memory_space<vmem>>, vector<1x1x32xf32>
    %24 = vector.shape_cast %23 : vector<1x1x32xf32> to vector<1x32xf32>
    %25 = vector.broadcast %24 : vector<1x32xf32> to vector<16x32xf32>
    %26 = arith.mulf %10, %25 : vector<16x32xf32>
    %27 = vector.shape_cast %26 : vector<16x32xf32> to vector<2x8x32xf32>
    %28 = vector.broadcast %24 : vector<1x32xf32> to vector<16x32xf32>
    %29 = arith.mulf %20, %28 : vector<16x32xf32>
    %30 = vector.shape_cast %29 : vector<16x32xf32> to vector<2x8x32xf32>
    "tpu.trace_start"() <{level = 10 : i32, message = "bqd,bkd->bqk"}> : () -> ()
    %cst_24 = arith.constant dense<0.000000e+00> : vector<2x8x8xf32>
    %31 = tpu.matmul %27, %21, %cst_24 {dimension_numbers = #tpu.dot_dimension_numbers<[2], [2], [1], [1], [0, 0, 0, 1, 1, 1], [0], [0]>} : vector<2x8x32xf32>, vector<2x8x32xf32>, vector<2x8x8xf32> -> vector<2x8x8xf32>
    "tpu.trace_stop"() : () -> ()
    %cst_25 = arith.constant dense<0xFF800000> : vector<2x8xf32>
    %32 = vector.multi_reduction <maximumf>, %31, %cst_25 [2] : vector<2x8x8xf32> to vector<2x8xf32>
    %33 = vector.shape_cast %32 : vector<2x8xf32> to vector<2x8x1xf32>
    %34 = vector.broadcast %33 : vector<2x8x1xf32> to vector<2x8x8xf32>
    %35 = arith.subf %31, %34 : vector<2x8x8xf32>
    %36 = math.exp %35 : vector<2x8x8xf32>
    %cst_26 = arith.constant dense<0.000000e+00> : vector<2x8xf32>
    %37 = vector.multi_reduction <add>, %36, %cst_26 [2] : vector<2x8x8xf32> to vector<2x8xf32>
    %38 = vector.shape_cast %37 : vector<2x8xf32> to vector<2x8x1xf32>
    %39 = tpu.reciprocal %38 {approx = true} : vector<2x8x1xf32> -> vector<2x8x1xf32>
    %40 = vector.broadcast %39 : vector<2x8x1xf32> to vector<2x8x8xf32>
    %41 = arith.mulf %36, %40 : vector<2x8x8xf32>
    "tpu.trace_start"() <{level = 10 : i32, message = "bqk,bkd->bqd"}> : () -> ()
    %cst_27 = arith.constant dense<0.000000e+00> : vector<2x8x32xf32>
    %42 = tpu.matmul %41, %30, %cst_27 {dimension_numbers = #tpu.dot_dimension_numbers<[2], [1], [1], [2], [0, 0, 0, 1, 1, 2], [0], [0]>} : vector<2x8x8xf32>, vector<2x8x32xf32>, vector<2x8x32xf32> -> vector<2x8x32xf32>
    "tpu.trace_stop"() : () -> ()
    %43 = vector.shape_cast %42 : vector<2x8x32xf32> to vector<16x32xf32>
    %44 = arith.addf %22, %43 : vector<16x32xf32>
    %c1 = arith.constant 1 : index
    %c0_28 = arith.constant 0 : index
    %c0_29 = arith.constant 0 : index
    %45 = vector.load %arg2[%c1, %c0_28, %c0_29] : memref<4x1x32xf32, #tpu.memory_space<vmem>>, vector<1x1x32xf32>
    %46 = vector.shape_cast %45 : vector<1x1x32xf32> to vector<1x32xf32>
    %47 = vector.broadcast %46 : vector<1x32xf32> to vector<16x32xf32>
    %48 = arith.mulf %10, %47 : vector<16x32xf32>
    %49 = vector.shape_cast %48 : vector<16x32xf32> to vector<2x8x32xf32>
    %50 = vector.broadcast %46 : vector<1x32xf32> to vector<16x32xf32>
    %51 = arith.mulf %20, %50 : vector<16x32xf32>
    %52 = vector.shape_cast %51 : vector<16x32xf32> to vector<2x8x32xf32>
    "tpu.trace_start"() <{level = 10 : i32, message = "bqd,bkd->bqk"}> : () -> ()
    %cst_30 = arith.constant dense<0.000000e+00> : vector<2x8x8xf32>
    %53 = tpu.matmul %49, %21, %cst_30 {dimension_numbers = #tpu.dot_dimension_numbers<[2], [2], [1], [1], [0, 0, 0, 1, 1, 1], [0], [0]>} : vector<2x8x32xf32>, vector<2x8x32xf32>, vector<2x8x8xf32> -> vector<2x8x8xf32>
    "tpu.trace_stop"() : () -> ()
    %cst_31 = arith.constant dense<0xFF800000> : vector<2x8xf32>
    %54 = vector.multi_reduction <maximumf>, %53, %cst_31 [2] : vector<2x8x8xf32> to vector<2x8xf32>
    %55 = vector.shape_cast %54 : vector<2x8xf32> to vector<2x8x1xf32>
    %56 = vector.broadcast %55 : vector<2x8x1xf32> to vector<2x8x8xf32>
    %57 = arith.subf %53, %56 : vector<2x8x8xf32>
    %58 = math.exp %57 : vector<2x8x8xf32>
    %cst_32 = arith.constant dense<0.000000e+00> : vector<2x8xf32>
    %59 = vector.multi_reduction <add>, %58, %cst_32 [2] : vector<2x8x8xf32> to vector<2x8xf32>
    %60 = vector.shape_cast %59 : vector<2x8xf32> to vector<2x8x1xf32>
    %61 = tpu.reciprocal %60 {approx = true} : vector<2x8x1xf32> -> vector<2x8x1xf32>
    %62 = vector.broadcast %61 : vector<2x8x1xf32> to vector<2x8x8xf32>
    %63 = arith.mulf %58, %62 : vector<2x8x8xf32>
    "tpu.trace_start"() <{level = 10 : i32, message = "bqk,bkd->bqd"}> : () -> ()
    %cst_33 = arith.constant dense<0.000000e+00> : vector<2x8x32xf32>
    %64 = tpu.matmul %63, %52, %cst_33 {dimension_numbers = #tpu.dot_dimension_numbers<[2], [1], [1], [2], [0, 0, 0, 1, 1, 2], [0], [0]>} : vector<2x8x8xf32>, vector<2x8x32xf32>, vector<2x8x32xf32> -> vector<2x8x32xf32>
    "tpu.trace_stop"() : () -> ()
    %65 = vector.shape_cast %64 : vector<2x8x32xf32> to vector<16x32xf32>
    %66 = arith.addf %44, %65 : vector<16x32xf32>
    %c2 = arith.constant 2 : index
    %c0_34 = arith.constant 0 : index
    %c0_35 = arith.constant 0 : index
    %67 = vector.load %arg2[%c2, %c0_34, %c0_35] : memref<4x1x32xf32, #tpu.memory_space<vmem>>, vector<1x1x32xf32>
    %68 = vector.shape_cast %67 : vector<1x1x32xf32> to vector<1x32xf32>
    %69 = vector.broadcast %68 : vector<1x32xf32> to vector<16x32xf32>
    %70 = arith.mulf %10, %69 : vector<16x32xf32>
    %71 = vector.shape_cast %70 : vector<16x32xf32> to vector<2x8x32xf32>
    %72 = vector.broadcast %68 : vector<1x32xf32> to vector<16x32xf32>
    %73 = arith.mulf %20, %72 : vector<16x32xf32>
    %74 = vector.shape_cast %73 : vector<16x32xf32> to vector<2x8x32xf32>
    "tpu.trace_start"() <{level = 10 : i32, message = "bqd,bkd->bqk"}> : () -> ()
    %cst_36 = arith.constant dense<0.000000e+00> : vector<2x8x8xf32>
    %75 = tpu.matmul %71, %21, %cst_36 {dimension_numbers = #tpu.dot_dimension_numbers<[2], [2], [1], [1], [0, 0, 0, 1, 1, 1], [0], [0]>} : vector<2x8x32xf32>, vector<2x8x32xf32>, vector<2x8x8xf32> -> vector<2x8x8xf32>
    "tpu.trace_stop"() : () -> ()
    %cst_37 = arith.constant dense<0xFF800000> : vector<2x8xf32>
    %76 = vector.multi_reduction <maximumf>, %75, %cst_37 [2] : vector<2x8x8xf32> to vector<2x8xf32>
    %77 = vector.shape_cast %76 : vector<2x8xf32> to vector<2x8x1xf32>
    %78 = vector.broadcast %77 : vector<2x8x1xf32> to vector<2x8x8xf32>
    %79 = arith.subf %75, %78 : vector<2x8x8xf32>
    %80 = math.exp %79 : vector<2x8x8xf32>
    %cst_38 = arith.constant dense<0.000000e+00> : vector<2x8xf32>
    %81 = vector.multi_reduction <add>, %80, %cst_38 [2] : vector<2x8x8xf32> to vector<2x8xf32>
    %82 = vector.shape_cast %81 : vector<2x8xf32> to vector<2x8x1xf32>
    %83 = tpu.reciprocal %82 {approx = true} : vector<2x8x1xf32> -> vector<2x8x1xf32>
    %84 = vector.broadcast %83 : vector<2x8x1xf32> to vector<2x8x8xf32>
    %85 = arith.mulf %80, %84 : vector<2x8x8xf32>
    "tpu.trace_start"() <{level = 10 : i32, message = "bqk,bkd->bqd"}> : () -> ()
    %cst_39 = arith.constant dense<0.000000e+00> : vector<2x8x32xf32>
    %86 = tpu.matmul %85, %74, %cst_39 {dimension_numbers = #tpu.dot_dimension_numbers<[2], [1], [1], [2], [0, 0, 0, 1, 1, 2], [0], [0]>} : vector<2x8x8xf32>, vector<2x8x32xf32>, vector<2x8x32xf32> -> vector<2x8x32xf32>
    "tpu.trace_stop"() : () -> ()
    %87 = vector.shape_cast %86 : vector<2x8x32xf32> to vector<16x32xf32>
    %88 = arith.addf %66, %87 : vector<16x32xf32>
    %c3 = arith.constant 3 : index
    %c0_40 = arith.constant 0 : index
    %c0_41 = arith.constant 0 : index
    %89 = vector.load %arg2[%c3, %c0_40, %c0_41] : memref<4x1x32xf32, #tpu.memory_space<vmem>>, vector<1x1x32xf32>
    %90 = vector.shape_cast %89 : vector<1x1x32xf32> to vector<1x32xf32>
    %91 = vector.broadcast %90 : vector<1x32xf32> to vector<16x32xf32>
    %92 = arith.mulf %10, %91 : vector<16x32xf32>
    %93 = vector.shape_cast %92 : vector<16x32xf32> to vector<2x8x32xf32>
    %94 = vector.broadcast %90 : vector<1x32xf32> to vector<16x32xf32>
    %95 = arith.mulf %20, %94 : vector<16x32xf32>
    %96 = vector.shape_cast %95 : vector<16x32xf32> to vector<2x8x32xf32>
    "tpu.trace_start"() <{level = 10 : i32, message = "bqd,bkd->bqk"}> : () -> ()
    %cst_42 = arith.constant dense<0.000000e+00> : vector<2x8x8xf32>
    %97 = tpu.matmul %93, %21, %cst_42 {dimension_numbers = #tpu.dot_dimension_numbers<[2], [2], [1], [1], [0, 0, 0, 1, 1, 1], [0], [0]>} : vector<2x8x32xf32>, vector<2x8x32xf32>, vector<2x8x8xf32> -> vector<2x8x8xf32>
    "tpu.trace_stop"() : () -> ()
    %cst_43 = arith.constant dense<0xFF800000> : vector<2x8xf32>
    %98 = vector.multi_reduction <maximumf>, %97, %cst_43 [2] : vector<2x8x8xf32> to vector<2x8xf32>
    %99 = vector.shape_cast %98 : vector<2x8xf32> to vector<2x8x1xf32>
    %100 = vector.broadcast %99 : vector<2x8x1xf32> to vector<2x8x8xf32>
    %101 = arith.subf %97, %100 : vector<2x8x8xf32>
    %102 = math.exp %101 : vector<2x8x8xf32>
    %cst_44 = arith.constant dense<0.000000e+00> : vector<2x8xf32>
    %103 = vector.multi_reduction <add>, %102, %cst_44 [2] : vector<2x8x8xf32> to vector<2x8xf32>
    %104 = vector.shape_cast %103 : vector<2x8xf32> to vector<2x8x1xf32>
    %105 = tpu.reciprocal %104 {approx = true} : vector<2x8x1xf32> -> vector<2x8x1xf32>
    %106 = vector.broadcast %105 : vector<2x8x1xf32> to vector<2x8x8xf32>
    %107 = arith.mulf %102, %106 : vector<2x8x8xf32>
    "tpu.trace_start"() <{level = 10 : i32, message = "bqk,bkd->bqd"}> : () -> ()
    %cst_45 = arith.constant dense<0.000000e+00> : vector<2x8x32xf32>
    %108 = tpu.matmul %107, %96, %cst_45 {dimension_numbers = #tpu.dot_dimension_numbers<[2], [1], [1], [2], [0, 0, 0, 1, 1, 2], [0], [0]>} : vector<2x8x8xf32>, vector<2x8x32xf32>, vector<2x8x32xf32> -> vector<2x8x32xf32>
    "tpu.trace_stop"() : () -> ()
    %109 = vector.shape_cast %108 : vector<2x8x32xf32> to vector<16x32xf32>
    %110 = arith.addf %88, %109 : vector<16x32xf32>
    %c0_46 = arith.constant 0 : index
    %c0_47 = arith.constant 0 : index
    %111 = vector.load %arg9[%c0_46, %c0_47] : memref<32x32xf32, #tpu.memory_space<vmem>>, vector<32x32xf32>
    %cst_48 = arith.constant dense<0.000000e+00> : vector<16x32xf32>
    %112 = tpu.matmul %110, %111, %cst_48 {dimension_numbers = #tpu.dot_dimension_numbers<[1], [0], [0], [1], [0, 0, 1, 1], [], []>} : vector<16x32xf32>, vector<32x32xf32>, vector<16x32xf32> -> vector<16x32xf32>
    %c0_49 = arith.constant 0 : index
    %c0_50 = arith.constant 0 : index
    %113 = vector.load %arg10[%c0_49, %c0_50] : memref<1x32xf32, #tpu.memory_space<vmem>>, vector<1x32xf32>
    %114 = vector.broadcast %113 : vector<1x32xf32> to vector<16x32xf32>
    %115 = arith.addf %112, %114 : vector<16x32xf32>
    %116 = arith.addf %115, %1 : vector<16x32xf32>
    %c0_51 = arith.constant 0 : index
    %c0_52 = arith.constant 0 : index
    %117 = vector.load %arg11[%c0_51, %c0_52] : memref<1x32xf32, #tpu.memory_space<vmem>>, vector<1x32xf32>
    %c0_53 = arith.constant 0 : index
    %c0_54 = arith.constant 0 : index
    %118 = vector.load %arg12[%c0_53, %c0_54] : memref<1x32xf32, #tpu.memory_space<vmem>>, vector<1x32xf32>
    %cst_55 = arith.constant dense<0.000000e+00> : vector<16xf32>
    %119 = vector.multi_reduction <add>, %116, %cst_55 [1] : vector<16x32xf32> to vector<16xf32>
    %120 = vector.shape_cast %119 : vector<16xf32> to vector<16x1xf32>
    %cst_56 = arith.constant 3.200000e+01 : f32
    %121 = vector.broadcast %cst_56 : f32 to vector<16x1xf32>
    %122 = arith.divf %120, %121 : vector<16x1xf32>
    %123 = vector.broadcast %122 : vector<16x1xf32> to vector<16x32xf32>
    %124 = arith.subf %116, %123 : vector<16x32xf32>
    %125 = arith.mulf %124, %124 : vector<16x32xf32>
    %cst_57 = arith.constant dense<0.000000e+00> : vector<16xf32>
    %126 = vector.multi_reduction <add>, %125, %cst_57 [1] : vector<16x32xf32> to vector<16xf32>
    %127 = vector.shape_cast %126 : vector<16xf32> to vector<16x1xf32>
    %cst_58 = arith.constant 3.200000e+01 : f32
    %128 = vector.broadcast %cst_58 : f32 to vector<16x1xf32>
    %129 = arith.divf %127, %128 : vector<16x1xf32>
    %130 = vector.broadcast %122 : vector<16x1xf32> to vector<16x32xf32>
    %131 = arith.subf %116, %130 : vector<16x32xf32>
    %cst_59 = arith.constant 9.99999974E-6 : f32
    %132 = vector.broadcast %cst_59 : f32 to vector<16x1xf32>
    %133 = arith.addf %129, %132 : vector<16x1xf32>
    %134 = math.rsqrt %133 : vector<16x1xf32>
    %135 = vector.broadcast %134 : vector<16x1xf32> to vector<16x32xf32>
    %136 = arith.mulf %131, %135 : vector<16x32xf32>
    %137 = vector.broadcast %117 : vector<1x32xf32> to vector<16x32xf32>
    %138 = arith.mulf %136, %137 : vector<16x32xf32>
    %139 = vector.broadcast %118 : vector<1x32xf32> to vector<16x32xf32>
    %140 = arith.addf %138, %139 : vector<16x32xf32>
    %c0_60 = arith.constant 0 : index
    %c0_61 = arith.constant 0 : index
    %141 = vector.load %arg13[%c0_60, %c0_61] : memref<32x32xf32, #tpu.memory_space<vmem>>, vector<32x32xf32>
    %cst_62 = arith.constant dense<0.000000e+00> : vector<16x32xf32>
    %142 = tpu.matmul %140, %141, %cst_62 {dimension_numbers = #tpu.dot_dimension_numbers<[1], [0], [0], [1], [0, 0, 1, 1], [], []>} : vector<16x32xf32>, vector<32x32xf32>, vector<16x32xf32> -> vector<16x32xf32>
    %c0_63 = arith.constant 0 : index
    %c0_64 = arith.constant 0 : index
    %143 = vector.load %arg14[%c0_63, %c0_64] : memref<1x32xf32, #tpu.memory_space<vmem>>, vector<1x32xf32>
    %144 = vector.broadcast %143 : vector<1x32xf32> to vector<16x32xf32>
    %145 = arith.addf %142, %144 : vector<16x32xf32>
    %cst_65 = arith.constant 0.000000e+00 : f32
    %146 = vector.broadcast %cst_65 : f32 to vector<16x32xf32>
    %147 = arith.maximumf %145, %146 : vector<16x32xf32>
    %148 = arith.addf %140, %147 : vector<16x32xf32>
    %c0_66 = arith.constant 0 : index
    %c0_67 = arith.constant 0 : index
    %149 = vector.load %arg15[%c0_66, %c0_67] : memref<1x32xf32, #tpu.memory_space<vmem>>, vector<1x32xf32>
    %c0_68 = arith.constant 0 : index
    %c0_69 = arith.constant 0 : index
    %150 = vector.load %arg16[%c0_68, %c0_69] : memref<1x32xf32, #tpu.memory_space<vmem>>, vector<1x32xf32>
    %cst_70 = arith.constant dense<0.000000e+00> : vector<16xf32>
    %151 = vector.multi_reduction <add>, %148, %cst_70 [1] : vector<16x32xf32> to vector<16xf32>
    %152 = vector.shape_cast %151 : vector<16xf32> to vector<16x1xf32>
    %cst_71 = arith.constant 3.200000e+01 : f32
    %153 = vector.broadcast %cst_71 : f32 to vector<16x1xf32>
    %154 = arith.divf %152, %153 : vector<16x1xf32>
    %155 = vector.broadcast %154 : vector<16x1xf32> to vector<16x32xf32>
    %156 = arith.subf %148, %155 : vector<16x32xf32>
    %157 = arith.mulf %156, %156 : vector<16x32xf32>
    %cst_72 = arith.constant dense<0.000000e+00> : vector<16xf32>
    %158 = vector.multi_reduction <add>, %157, %cst_72 [1] : vector<16x32xf32> to vector<16xf32>
    %159 = vector.shape_cast %158 : vector<16xf32> to vector<16x1xf32>
    %cst_73 = arith.constant 3.200000e+01 : f32
    %160 = vector.broadcast %cst_73 : f32 to vector<16x1xf32>
    %161 = arith.divf %159, %160 : vector<16x1xf32>
    %162 = vector.broadcast %154 : vector<16x1xf32> to vector<16x32xf32>
    %163 = arith.subf %148, %162 : vector<16x32xf32>
    %cst_74 = arith.constant 9.99999974E-6 : f32
    %164 = vector.broadcast %cst_74 : f32 to vector<16x1xf32>
    %165 = arith.addf %161, %164 : vector<16x1xf32>
    %166 = math.rsqrt %165 : vector<16x1xf32>
    %167 = vector.broadcast %166 : vector<16x1xf32> to vector<16x32xf32>
    %168 = arith.mulf %163, %167 : vector<16x32xf32>
    %169 = vector.broadcast %149 : vector<1x32xf32> to vector<16x32xf32>
    %170 = arith.mulf %168, %169 : vector<16x32xf32>
    %171 = vector.broadcast %150 : vector<1x32xf32> to vector<16x32xf32>
    %172 = arith.addf %170, %171 : vector<16x32xf32>
    %173 = vector.shape_cast %172 : vector<16x32xf32> to vector<2x8x32xf32>
    %c0_75 = arith.constant 0 : index
    %c0_76 = arith.constant 0 : index
    %c0_77 = arith.constant 0 : index
    %174 = vector.load %arg17[%c0_75, %c0_76, %c0_77] : memref<2x8x32xf32, #tpu.memory_space<vmem>>, vector<2x8x32xf32>
    tpu.vector_store %arg17[%c0_75, %c0_76, %c0_77], %173 {strides = array<i32>} : memref<2x8x32xf32, #tpu.memory_space<vmem>>, vector<2x8x32xf32>,
    return
  }
}

</mosaic_0001>

<llo_original>
// kernel: tpu_custom_call.1
$region0: #{tpu_custom_call.1}
  #allocation0 [shape = 'u32[]', space=smem, size = 0x4, offset = 0x4, fixed_abs, tag = 'smem constant byte address 0x4 - core index']
  #allocation1 [shape = 'u32[72,128]{1,0:T(1,128)}', space=vmem, size = 0x9000, scoped, tag = 'internal scratch']
  %s0 = inlined_call_operand.hbm [shape: f32[2,8,32], index: 0, kind: input, shape index: {}]
  %s1 = inlined_call_operand.hbm [shape: f32[2,8,32], index: 1, kind: input, shape index: {}]
  %s2 = inlined_call_operand.hbm [shape: f32[4,1,32], index: 2, kind: input, shape index: {}]
  %s3 = inlined_call_operand.hbm [shape: f32[32,32], index: 3, kind: input, shape index: {}]
  %s4 = inlined_call_operand.hbm [shape: f32[32,32], index: 4, kind: input, shape index: {}]
  %s5 = inlined_call_operand.hbm [shape: f32[32,32], index: 5, kind: input, shape index: {}]
  %s6 = inlined_call_operand.vmem [shape: f32[1,32], index: 6, kind: input, shape index: {}]
  %s7 = inlined_call_operand.vmem [shape: f32[1,32], index: 7, kind: input, shape index: {}]
  %s8 = inlined_call_operand.vmem [shape: f32[1,32], index: 8, kind: input, shape index: {}]
  %s9 = inlined_call_operand.hbm [shape: f32[32,32], index: 9, kind: input, shape index: {}]
  %s10 = inlined_call_operand.vmem [shape: f32[1,32], index: 10, kind: input, shape index: {}]
  %s11 = inlined_call_operand.vmem [shape: f32[1,32], index: 11, kind: input, shape index: {}]
  %s12 = inlined_call_operand.vmem [shape: f32[1,32], index: 12, kind: input, shape index: {}]
  %s13 = inlined_call_operand.hbm [shape: f32[32,32], index: 13, kind: input, shape index: {}]
  %s14 = inlined_call_operand.vmem [shape: f32[1,32], index: 14, kind: input, shape index: {}]
  %s15 = inlined_call_operand.vmem [shape: f32[1,32], index: 15, kind: input, shape index: {}]
  %s16 = inlined_call_operand.vmem [shape: f32[1,32], index: 16, kind: input, shape index: {}]
  %s17 = inlined_call_operand.hbm [shape: f32[2,8,32], index: 17, kind: output, shape index: {}]
  %s18 = sld [smem:[#allocation0]]
  $region110: #{tpu_custom_call.1} parent=0
    _
  %s20 = ssub.s32 1, %s18
  %s21 = scalar_select 0, %s20, %s18
  $region1: #{tpu_custom_call.1} parent=0
    #allocation2 [shape = 'u8[8192]{0}', space=vmem, size = 0x2000, scoped, tag = 'input window, operand 0, single buffered']
    #allocation3 [shape = 's32[1]{0}', space=sflag, size = 0x4, scoped, tag = 'scoped memory for tpu_custom_call.1']
    #allocation4 [shape = 's32[1]{0}', space=sflag, size = 0x4, scoped, tag = 'scoped memory for tpu_custom_call.1']
    #allocation5 [shape = 'u8[8192]{0}', space=vmem, size = 0x2000, scoped, tag = 'input window, operand 1, single buffered']
    #allocation6 [shape = 's32[1]{0}', space=sflag, size = 0x4, scoped, tag = 'scoped memory for tpu_custom_call.1']
    #allocation7 [shape = 'u8[2048]{0}', space=vmem, size = 0x800, scoped, tag = 'input window, operand 2, single buffered']
    #allocation8 [shape = 'u8[16384]{0}', space=vmem, size = 0x4000, scoped, tag = 'input window, operand 3, single buffered']
    #allocation9 [shape = 's32[1]{0}', space=sflag, size = 0x4, scoped, tag = 'scoped memory for tpu_custom_call.1']
    #allocation10 [shape = 'u8[16384]{0}', space=vmem, size = 0x4000, scoped, tag = 'input window, operand 4, single buffered']
    #allocation11 [shape = 'u8[16384]{0}', space=vmem, size = 0x4000, scoped, tag = 'input window, operand 5, single buffered']
    #allocation12 [shape = 's32[1]{0}', space=sflag, size = 0x4, scoped, tag = 'scoped memory for tpu_custom_call.1']
    #allocation13 [shape = 'u8[16384]{0}', space=vmem, size = 0x4000, scoped, tag = 'input window, operand 9, single buffered']
    #allocation14 [shape = 'u8[16384]{0}', space=vmem, size = 0x4000, scoped, tag = 'input window, operand 13, single buffered']
    #allocation15 [shape = 's32[1]{0}', space=sflag, size = 0x4, scoped, tag = 'scoped memory for tpu_custom_call.1']
    #allocation16 [shape = 'u8[8192]{0}', space=vmem, size = 0x2000, scoped, tag = 'output window, operand 0, single buffered']
    %22 = vsyncpa [#allocation3], 0
    %23 = vsyncpa [#allocation6], 0
    %24 = vsyncpa [#allocation9], 0
    %25 = vsyncpa [#allocation12], 0
    %26 = vsyncpa [#allocation15], 0
    %27 = vsyncpa [#allocation4], 0
    // Predicated region
    $region2: #{tpu_custom_call.1} parent=1 // pred_check
      _
    $region3: #{tpu_custom_call.1} parent=1 // pred_check_branch
      %29 = sbr.rel (0) target = $region5
    $region4: #{tpu_custom_call.1} parent=1 // pred_region
      %31 = vsyncadd [#allocation3], 0
      %s32 = sshll.u32 %s0, 4
      %s33 = int_to_ptr.hbm [resolvable:$true] %s32
      %s34 = sshll.u32 [#allocation2], 4
      %s35 = int_to_ptr.vmem [resolvable:$true] %s34
      %40 = dma.hbm_to_vmem [thread:$0]  %s33, 256, %s35, [#allocation3], 128, 128, 8
    $region5: #{tpu_custom_call.1} parent=1 // pred_fallthru
      _
    // Predicated region
    $region6: #{tpu_custom_call.1} parent=1 // pred_check
      _
    $region7: #{tpu_custom_call.1} parent=1 // pred_check_branch
      %42 = sbr.rel (0) target = $region9
    $region8: #{tpu_custom_call.1} parent=1 // pred_region
      %44 = vsyncadd [#allocation6], 0
      %s45 = sshll.u32 %s1, 4
      %s46 = int_to_ptr.hbm [resolvable:$true] %s45
      %s47 = sshll.u32 [#allocation5], 4
      %s48 = int_to_ptr.vmem [resolvable:$true] %s47
      %53 = dma.hbm_to_vmem [thread:$0]  %s46, 256, %s48, [#allocation6], 128, 128, 8
    $region9: #{tpu_custom_call.1} parent=1 // pred_fallthru
      _
    // Predicated region
    $region10: #{tpu_custom_call.1} parent=1 // pred_check
      _
    $region11: #{tpu_custom_call.1} parent=1 // pred_check_branch
      %55 = sbr.rel (0) target = $region13
    $region12: #{tpu_custom_call.1} parent=1 // pred_region
      %57 = vsyncadd [#allocation6], 0
      %s58 = sshll.u32 %s2, 4
      %s59 = int_to_ptr.hbm [resolvable:$true] %s58
      %s60 = sshll.u32 [#allocation7], 4
      %s61 = int_to_ptr.vmem [resolvable:$true] %s60
      %66 = dma.hbm_to_vmem [thread:$0]  %s59, 64, %s61, [#allocation6], 16, 16, 1
    $region13: #{tpu_custom_call.1} parent=1 // pred_fallthru
      _
    // Predicated region
    $region14: #{tpu_custom_call.1} parent=1 // pred_check
      _
    $region15: #{tpu_custom_call.1} parent=1 // pred_check_branch
      %68 = sbr.rel (0) target = $region17
    $region16: #{tpu_custom_call.1} parent=1 // pred_region
      %70 = vsyncadd [#allocation9], 0
      %s71 = sshll.u32 %s3, 4
      %s72 = int_to_ptr.hbm [resolvable:$true] %s71
      %s73 = sshll.u32 [#allocation8], 4
      %s74 = int_to_ptr.vmem [resolvable:$true] %s73
      %79 = dma.hbm_to_vmem [thread:$0]  %s72, 512, %s74, [#allocation9], 128, 128, 8
    $region17: #{tpu_custom_call.1} parent=1 // pred_fallthru
      _
    // Predicated region
    $region18: #{tpu_custom_call.1} parent=1 // pred_check
      _
    $region19: #{tpu_custom_call.1} parent=1 // pred_check_branch
      %81 = sbr.rel (0) target = $region21
    $region20: #{tpu_custom_call.1} parent=1 // pred_region
      %83 = vsyncadd [#allocation9], 0
      %s84 = sshll.u32 %s4, 4
      %s85 = int_to_ptr.hbm [resolvable:$true] %s84
      %s86 = sshll.u32 [#allocation10], 4
      %s87 = int_to_ptr.vmem [resolvable:$true] %s86
      %92 = dma.hbm_to_vmem [thread:$0]  %s85, 512, %s87, [#allocation9], 128, 128, 8
    $region21: #{tpu_custom_call.1} parent=1 // pred_fallthru
      _
    // Predicated region
    $region22: #{tpu_custom_call.1} parent=1 // pred_check
      _
    $region23: #{tpu_custom_call.1} parent=1 // pred_check_branch
      %94 = sbr.rel (0) target = $region25
    $region24: #{tpu_custom_call.1} parent=1 // pred_region
      %96 = vsyncadd [#allocation12], 0
      %s97 = sshll.u32 %s5, 4
      %s98 = int_to_ptr.hbm [resolvable:$true] %s97
      %s99 = sshll.u32 [#allocation11], 4
      %s100 = int_to_ptr.vmem [resolvable:$true] %s99
      %105 = dma.hbm_to_vmem [thread:$0]  %s98, 512, %s100, [#allocation12], 128, 128, 8
    $region25: #{tpu_custom_call.1} parent=1 // pred_fallthru
      _
    // Predicated region
    $region26: #{tpu_custom_call.1} parent=1 // pred_check
      _
    $region27: #{tpu_custom_call.1} parent=1 // pred_check_branch
      %107 = sbr.rel (0) target = $region29
    $region28: #{tpu_custom_call.1} parent=1 // pred_region
      _
    $region29: #{tpu_custom_call.1} parent=1 // pred_fallthru
      _
    // Predicated region
    $region30: #{tpu_custom_call.1} parent=1 // pred_check
      _
    $region31: #{tpu_custom_call.1} parent=1 // pred_check_branch
      %109 = sbr.rel (0) target = $region33
    $region32: #{tpu_custom_call.1} parent=1 // pred_region
      _
    $region33: #{tpu_custom_call.1} parent=1 // pred_fallthru
      _
    // Predicated region
    $region34: #{tpu_custom_call.1} parent=1 // pred_check
      _
    $region35: #{tpu_custom_call.1} parent=1 // pred_check_branch
      %111 = sbr.rel (0) target = $region37
    $region36: #{tpu_custom_call.1} parent=1 // pred_region
      _
    $region37: #{tpu_custom_call.1} parent=1 // pred_fallthru
      _
    // Predicated region
    $region38: #{tpu_custom_call.1} parent=1 // pred_check
      _
    $region39: #{tpu_custom_call.1} parent=1 // pred_check_branch
      %113 = sbr.rel (0) target = $region41
    $region40: #{tpu_custom_call.1} parent=1 // pred_region
      %115 = vsyncadd [#allocation12], 0
      %s116 = sshll.u32 %s9, 4
      %s117 = int_to_ptr.hbm [resolvable:$true] %s116
      %s118 = sshll.u32 [#allocation13], 4
      %s119 = int_to_ptr.vmem [resolvable:$true] %s118
      %124 = dma.hbm_to_vmem [thread:$0]  %s117, 512, %s119, [#allocation12], 128, 128, 8
    $region41: #{tpu_custom_call.1} parent=1 // pred_fallthru
      _
    // Predicated region
    $region42: #{tpu_custom_call.1} parent=1 // pred_check
      _
    $region43: #{tpu_custom_call.1} parent=1 // pred_check_branch
      %126 = sbr.rel (0) target = $region45
    $region44: #{tpu_custom_call.1} parent=1 // pred_region
      _
    $region45: #{tpu_custom_call.1} parent=1 // pred_fallthru
      _
    // Predicated region
    $region46: #{tpu_custom_call.1} parent=1 // pred_check
      _
    $region47: #{tpu_custom_call.1} parent=1 // pred_check_branch
      %128 = sbr.rel (0) target = $region49
    $region48: #{tpu_custom_call.1} parent=1 // pred_region
      _
    $region49: #{tpu_custom_call.1} parent=1 // pred_fallthru
      _
    // Predicated region
    $region50: #{tpu_custom_call.1} parent=1 // pred_check
      _
    $region51: #{tpu_custom_call.1} parent=1 // pred_check_branch
      %130 = sbr.rel (0) target = $region53
    $region52: #{tpu_custom_call.1} parent=1 // pred_region
      _
    $region53: #{tpu_custom_call.1} parent=1 // pred_fallthru
      _
    // Predicated region
    $region54: #{tpu_custom_call.1} parent=1 // pred_check
      _
    $region55: #{tpu_custom_call.1} parent=1 // pred_check_branch
      %132 = sbr.rel (0) target = $region57
    $region56: #{tpu_custom_call.1} parent=1 // pred_region
      %134 = vsyncadd [#allocation15], 0
      %s135 = sshll.u32 %s13, 4
      %s136 = int_to_ptr.hbm [resolvable:$true] %s135
      %s137 = sshll.u32 [#allocation14], 4
      %s138 = int_to_ptr.vmem [resolvable:$true] %s137
      %143 = dma.hbm_to_vmem [thread:$0]  %s136, 512, %s138, [#allocation15], 128, 128, 8
    $region57: #{tpu_custom_call.1} parent=1 // pred_fallthru
      _
    // Predicated region
    $region58: #{tpu_custom_call.1} parent=1 // pred_check
      _
    $region59: #{tpu_custom_call.1} parent=1 // pred_check_branch
      %145 = sbr.rel (0) target = $region61
    $region60: #{tpu_custom_call.1} parent=1 // pred_region
      _
    $region61: #{tpu_custom_call.1} parent=1 // pred_fallthru
      _
    // Predicated region
    $region62: #{tpu_custom_call.1} parent=1 // pred_check
      _
    $region63: #{tpu_custom_call.1} parent=1 // pred_check_branch
      %147 = sbr.rel (0) target = $region65
    $region64: #{tpu_custom_call.1} parent=1 // pred_region
      _
    $region65: #{tpu_custom_call.1} parent=1 // pred_fallthru
      _
    // Predicated region
    $region66: #{tpu_custom_call.1} parent=1 // pred_check
      _
    $region67: #{tpu_custom_call.1} parent=1 // pred_check_branch
      %149 = sbr.rel (0) target = $region69
    $region68: #{tpu_custom_call.1} parent=1 // pred_region
      _
    $region69: #{tpu_custom_call.1} parent=1 // pred_fallthru
      _
    // Predicated region
    $region70: #{tpu_custom_call.1} parent=1 // pred_check
      _
    $region71: #{tpu_custom_call.1} parent=1 // pred_check_branch
      %151 = sbr.rel (0) target = $region73
    $region72: #{tpu_custom_call.1} parent=1 // pred_region
      %153 = dma.done [#allocation3], 256
    $region73: #{tpu_custom_call.1} parent=1 // pred_fallthru
      _
    // Predicated region
    $region74: #{tpu_custom_call.1} parent=1 // pred_check
      _
    $region75: #{tpu_custom_call.1} parent=1 // pred_check_branch
      %155 = sbr.rel (0) target = $region77
    $region76: #{tpu_custom_call.1} parent=1 // pred_region
      %157 = dma.done [#allocation6], 256
    $region77: #{tpu_custom_call.1} parent=1 // pred_fallthru
      _
    // Predicated region
    $region78: #{tpu_custom_call.1} parent=1 // pred_check
      _
    $region79: #{tpu_custom_call.1} parent=1 // pred_check_branch
      %159 = sbr.rel (0) target = $region81
    $region80: #{tpu_custom_call.1} parent=1 // pred_region
      %161 = dma.done [#allocation6], 64
    $region81: #{tpu_custom_call.1} parent=1 // pred_fallthru
      _
    // Predicated region
    $region82: #{tpu_custom_call.1} parent=1 // pred_check
      _
    $region83: #{tpu_custom_call.1} parent=1 // pred_check_branch
      %163 = sbr.rel (0) target = $region85
    $region84: #{tpu_custom_call.1} parent=1 // pred_region
      %165 = dma.done [#allocation9], 512
    $region85: #{tpu_custom_call.1} parent=1 // pred_fallthru
      _
    // Predicated region
    $region86: #{tpu_custom_call.1} parent=1 // pred_check
      _
    $region87: #{tpu_custom_call.1} parent=1 // pred_check_branch
      %167 = sbr.rel (0) target = $region89
    $region88: #{tpu_custom_call.1} parent=1 // pred_region
      %169 = dma.done [#allocation9], 512
    $region89: #{tpu_custom_call.1} parent=1 // pred_fallthru
      _
    // Predicated region
    $region90: #{tpu_custom_call.1} parent=1 // pred_check
      _
    $region91: #{tpu_custom_call.1} parent=1 // pred_check_branch
      %171 = sbr.rel (0) target = $region93
    $region92: #{tpu_custom_call.1} parent=1 // pred_region
      %173 = dma.done [#allocation12], 512
    $region93: #{tpu_custom_call.1} parent=1 // pred_fallthru
      _
    // Predicated region
    $region94: #{tpu_custom_call.1} parent=1 // pred_check
      _
    $region95: #{tpu_custom_call.1} parent=1 // pred_check_branch
      %175 = sbr.rel (0) target = $region97
    $region96: #{tpu_custom_call.1} parent=1 // pred_region
      %177 = dma.done [#allocation12], 512
    $region97: #{tpu_custom_call.1} parent=1 // pred_fallthru
      _
    // Predicated region
    $region98: #{tpu_custom_call.1} parent=1 // pred_check
      _
    $region99: #{tpu_custom_call.1} parent=1 // pred_check_branch
      %179 = sbr.rel (0) target = $region101
    $region100: #{tpu_custom_call.1} parent=1 // pred_region
      %181 = dma.done [#allocation15], 512
    $region101: #{tpu_custom_call.1} parent=1 // pred_fallthru
      _
    %v182 = vld [vmem:[#allocation2] sm:$0xff]
    %v183 = vld [vmem:[#allocation2 + $0x8] sm:$0xff]
    %v184 = vld [vmem:[#allocation5] sm:$0xff]
    %v185 = vld [vmem:[#allocation5 + $0x8] sm:$0xff]
    %v186 = vld [vmem:[#allocation8] sm:$0xff]
    %v187 = vld [vmem:[#allocation8 + $0x8] sm:$0xff]
    %v188 = vld [vmem:[#allocation8 + $0x10] sm:$0xff]
    %v189 = vld [vmem:[#allocation8 + $0x18] sm:$0xff]
    %v190 = vld [vmem:[%s6] sm:$0x1]
    %v192 = vperm.slane %v190, 0
    %vm194 = vcmask 261120
    %v196 = vsel %vm194, %v182, 0
    %v199 = vsel %vm194, %v183, 0
    %201 = vmatpush.msra.mxu0 0.0
    %202 = vmatpush.msra.mxu0 0.0
    %203 = vmatpush.msra.mxu0 0.0
    %204 = vmatpush.msra.mxu0 0.0
    %205 = vmatpush.msra.mxu0 0.0
    %206 = vmatpush.msra.mxu0 0.0
    %207 = vmatpush.msra.mxu0 0.0
    %208 = vmatpush.msra.mxu0 0.0
    %209 = vmatpush.msra.mxu0 0.0
    %210 = vmatpush.msra.mxu0 0.0
    %211 = vmatpush.msra.mxu0 0.0
    %212 = vmatpush.msra.mxu0 0.0
    %213 = vmatpush.msra.mxu0 %v189
    %214 = vmatpush.msra.mxu0 %v188
    %215 = vmatpush.msra.mxu0 %v187
    %216 = vmatpush.msra.mxu0 %v186
    %217 = vmatmul.f32.gmra.mxu0 %v196
    %v218 = vpop.f32.mrf.mxu0
    %v219 = vadd.f32 %v192, %v218
    %220 = vmatmul.f32.gmra.mxu0 %v199
    %v221 = vpop.f32.mrf.mxu0
    %v222 = vadd.f32 %v192, %v221
    %223 = vdwg.mxu0
    %v224 = vmul.f32 %v219, 0.35355338
    %v225 = vmul.f32 %v222, 0.35355338
    %v226 = vld [vmem:[#allocation10] sm:$0xff]
    %v227 = vld [vmem:[#allocation10 + $0x8] sm:$0xff]
    %v228 = vld [vmem:[#allocation10 + $0x10] sm:$0xff]
    %v229 = vld [vmem:[#allocation10 + $0x18] sm:$0xff]
    %v230 = vld [vmem:[%s7] sm:$0x1]
    %v232 = vperm.slane %v230, 0
    %v235 = vsel %vm194, %v184, 0
    %v238 = vsel %vm194, %v185, 0
    %240 = vmatpush.msra.mxu0 0.0
    %241 = vmatpush.msra.mxu0 0.0
    %242 = vmatpush.msra.mxu0 0.0
    %243 = vmatpush.msra.mxu0 0.0
    %244 = vmatpush.msra.mxu0 0.0
    %245 = vmatpush.msra.mxu0 0.0
    %246 = vmatpush.msra.mxu0 0.0
    %247 = vmatpush.msra.mxu0 0.0
    %248 = vmatpush.msra.mxu0 0.0
    %249 = vmatpush.msra.mxu0 0.0
    %250 = vmatpush.msra.mxu0 0.0
    %251 = vmatpush.msra.mxu0 0.0
    %252 = vmatpush.msra.mxu0 %v229
    %253 = vmatpush.msra.mxu0 %v228
    %254 = vmatpush.msra.mxu0 %v227
    %255 = vmatpush.msra.mxu0 %v226
    %256 = vmatmul.f32.gmra.mxu0 %v235
    %v257 = vpop.f32.mrf.mxu0
    %v258 = vadd.f32 %v232, %v257
    %259 = vmatmul.f32.gmra.mxu0 %v238
    %v260 = vpop.f32.mrf.mxu0
    %v261 = vadd.f32 %v232, %v260
    %262 = vdwg.mxu0
    %v263 = vld [vmem:[#allocation11] sm:$0xff]
    %v264 = vld [vmem:[#allocation11 + $0x8] sm:$0xff]
    %v265 = vld [vmem:[#allocation11 + $0x10] sm:$0xff]
    %v266 = vld [vmem:[#allocation11 + $0x18] sm:$0xff]
    %v267 = vld [vmem:[%s8] sm:$0x1]
    %v269 = vperm.slane %v267, 0
    %271 = vmatpush.msra.mxu0 0.0
    %272 = vmatpush.msra.mxu0 0.0
    %273 = vmatpush.msra.mxu0 0.0
    %274 = vmatpush.msra.mxu0 0.0
    %275 = vmatpush.msra.mxu0 0.0
    %276 = vmatpush.msra.mxu0 0.0
    %277 = vmatpush.msra.mxu0 0.0
    %278 = vmatpush.msra.mxu0 0.0
    %279 = vmatpush.msra.mxu0 0.0
    %280 = vmatpush.msra.mxu0 0.0
    %281 = vmatpush.msra.mxu0 0.0
    %282 = vmatpush.msra.mxu0 0.0
    %283 = vmatpush.msra.mxu0 %v266
    %284 = vmatpush.msra.mxu0 %v265
    %285 = vmatpush.msra.mxu0 %v264
    %286 = vmatpush.msra.mxu0 %v263
    %287 = vmatmul.f32.gmra.mxu0 %v235
    %v288 = vpop.f32.mrf.mxu0
    %v289 = vadd.f32 %v269, %v288
    %290 = vmatmul.f32.gmra.mxu0 %v238
    %v291 = vpop.f32.mrf.mxu0
    %v292 = vadd.f32 %v269, %v291
    %293 = vdwg.mxu0
    %v294 = vld [vmem:[#allocation7] sm:$0x1]
    %v296 = vperm.slane %v294, 0
    %v298 = vmul.f32 %v224, %v296
    %v299 = vmul.f32 %v225, %v296
    %v300 = vmul.f32 %v289, %v296
    %v301 = vmul.f32 %v292, %v296
    %v303 = vsel %vm194, %v298, 0
    %v306 = vsel %vm194, %v258, 0
    %308 = vmatpush.xpose.msra.mxu0 0.0
    %309 = vmatpush.xpose.msra.mxu0 0.0
    %310 = vmatpush.xpose.msra.mxu0 0.0
    %311 = vmatpush.xpose.msra.mxu0 0.0
    %312 = vmatpush.xpose.msra.mxu0 0.0
    %313 = vmatpush.xpose.msra.mxu0 0.0
    %314 = vmatpush.xpose.msra.mxu0 0.0
    %315 = vmatpush.xpose.msra.mxu0 0.0
    %316 = vmatpush.xpose.msra.mxu0 0.0
    %317 = vmatpush.xpose.msra.mxu0 0.0
    %318 = vmatpush.xpose.msra.mxu0 0.0
    %319 = vmatpush.xpose.msra.mxu0 0.0
    %320 = vmatpush.xpose.msra.mxu0 0.0
    %321 = vmatpush.xpose.msra.mxu0 0.0
    %322 = vmatpush.xpose.msra.mxu0 0.0
    %323 = vmatpush.xpose.msra.mxu0 %v306
    %324 = vmatmul.f32.gmra.mxu0 %v303
    %v325 = vpop.f32.mrf.mxu0
    %v326 = vadd.f32 0.0, %v325
    %327 = vdwg.mxu0
    %v329 = vsel %vm194, %v299, 0
    %v332 = vsel %vm194, %v261, 0
    %334 = vmatpush.xpose.msra.mxu0 0.0
    %335 = vmatpush.xpose.msra.mxu0 0.0
    %336 = vmatpush.xpose.msra.mxu0 0.0
    %337 = vmatpush.xpose.msra.mxu0 0.0
    %338 = vmatpush.xpose.msra.mxu0 0.0
    %339 = vmatpush.xpose.msra.mxu0 0.0
    %340 = vmatpush.xpose.msra.mxu0 0.0
    %341 = vmatpush.xpose.msra.mxu0 0.0
    %342 = vmatpush.xpose.msra.mxu0 0.0
    %343 = vmatpush.xpose.msra.mxu0 0.0
    %344 = vmatpush.xpose.msra.mxu0 0.0
    %345 = vmatpush.xpose.msra.mxu0 0.0
    %346 = vmatpush.xpose.msra.mxu0 0.0
    %347 = vmatpush.xpose.msra.mxu0 0.0
    %348 = vmatpush.xpose.msra.mxu0 0.0
    %349 = vmatpush.xpose.msra.mxu0 %v332
    %350 = vmatmul.f32.gmra.mxu0 %v329
    %v351 = vpop.f32.mrf.mxu0
    %v352 = vadd.f32 0.0, %v351
    %353 = vdwg.mxu0
    %vm354 = vcmask 64512
    %v355 = vsel %vm354, %v326, -inf
    %356 = vmax.xlane.f32.xlu0 %v355
    %v357 = vpop.xlane.xlu0 %356
    %v358 = vsel %vm354, %v352, -inf
    %359 = vmax.xlane.f32.xlu0 %v358
    %v360 = vpop.xlane.xlu0 %359
    %v361 = vsub.f32 %v326, %v357
    %v362 = vsub.f32 %v352, %v360
    %v363 = vmul.f32 %v361, 1.442695
    %v364 = vpow.pop %v363
    %v365 = vmul.f32 %v362, 1.442695
    %v366 = vpow.pop %v365
    %v367 = vsel %vm354, %v364, 0.0
    %368 = vadd.xlane.f32.xlu0 %v367
    %v369 = vpop.xlane.xlu0 %368
    %v370 = vsel %vm354, %v366, 0.0
    %371 = vadd.xlane.f32.xlu0 %v370
    %v372 = vpop.xlane.xlu0 %371
    %v373 = vrcp.pop %v369
    %v374 = vrcp.pop %v372
    %v375 = vmul.f32 %v364, %v373
    %v376 = vmul.f32 %v366, %v374
    %v378 = vsel %vm354, %v375, 0
    %380 = vmatpush.msra.mxu0 0.0
    %381 = vmatpush.msra.mxu0 0.0
    %382 = vmatpush.msra.mxu0 0.0
    %383 = vmatpush.msra.mxu0 0.0
    %384 = vmatpush.msra.mxu0 0.0
    %385 = vmatpush.msra.mxu0 0.0
    %386 = vmatpush.msra.mxu0 0.0
    %387 = vmatpush.msra.mxu0 0.0
    %388 = vmatpush.msra.mxu0 0.0
    %389 = vmatpush.msra.mxu0 0.0
    %390 = vmatpush.msra.mxu0 0.0
    %391 = vmatpush.msra.mxu0 0.0
    %392 = vmatpush.msra.mxu0 0.0
    %393 = vmatpush.msra.mxu0 0.0
    %394 = vmatpush.msra.mxu0 0.0
    %395 = vmatpush.msra.mxu0 %v300
    %396 = vmatmul.f32.gmra.mxu0 %v378
    %v397 = vpop.f32.mrf.mxu0
    %v398 = vadd.f32 0.0, %v397
    %399 = vdwg.mxu0
    %v401 = vsel %vm354, %v376, 0
    %403 = vmatpush.msra.mxu0 0.0
    %404 = vmatpush.msra.mxu0 0.0
    %405 = vmatpush.msra.mxu0 0.0
    %406 = vmatpush.msra.mxu0 0.0
    %407 = vmatpush.msra.mxu0 0.0
    %408 = vmatpush.msra.mxu0 0.0
    %409 = vmatpush.msra.mxu0 0.0
    %410 = vmatpush.msra.mxu0 0.0
    %411 = vmatpush.msra.mxu0 0.0
    %412 = vmatpush.msra.mxu0 0.0
    %413 = vmatpush.msra.mxu0 0.0
    %414 = vmatpush.msra.mxu0 0.0
    %415 = vmatpush.msra.mxu0 0.0
    %416 = vmatpush.msra.mxu0 0.0
    %417 = vmatpush.msra.mxu0 0.0
    %418 = vmatpush.msra.mxu0 %v301
    %419 = vmatmul.f32.gmra.mxu0 %v401
    %v420 = vpop.f32.mrf.mxu0
    %v421 = vadd.f32 0.0, %v420
    %422 = vdwg.mxu0
    %v423 = vadd.f32 %v398, 0.0
    %v424 = vadd.f32 %v421, 0.0
    %s425 = scalar_lea.vmem [#allocation7], 1
    %v426 = vld [vmem:[%s425] sm:$0x1]
    %v428 = vperm.slane %v426, 0
    %v430 = vmul.f32 %v224, %v428
    %v431 = vmul.f32 %v225, %v428
    %v432 = vmul.f32 %v289, %v428
    %v433 = vmul.f32 %v292, %v428
    %v435 = vsel %vm194, %v430, 0
    %437 = vmatpush.xpose.msra.mxu0 0.0
    %438 = vmatpush.xpose.msra.mxu0 0.0
    %439 = vmatpush.xpose.msra.mxu0 0.0
    %440 = vmatpush.xpose.msra.mxu0 0.0
    %441 = vmatpush.xpose.msra.mxu0 0.0
    %442 = vmatpush.xpose.msra.mxu0 0.0
    %443 = vmatpush.xpose.msra.mxu0 0.0
    %444 = vmatpush.xpose.msra.mxu0 0.0
    %445 = vmatpush.xpose.msra.mxu0 0.0
    %446 = vmatpush.xpose.msra.mxu0 0.0
    %447 = vmatpush.xpose.msra.mxu0 0.0
    %448 = vmatpush.xpose.msra.mxu0 0.0
    %449 = vmatpush.xpose.msra.mxu0 0.0
    %450 = vmatpush.xpose.msra.mxu0 0.0
    %451 = vmatpush.xpose.msra.mxu0 0.0
    %452 = vmatpush.xpose.msra.mxu0 %v306
    %453 = vmatmul.f32.gmra.mxu0 %v435
    %v454 = vpop.f32.mrf.mxu0
    %v455 = vadd.f32 0.0, %v454
    %456 = vdwg.mxu0
    %v458 = vsel %vm194, %v431, 0
    %460 = vmatpush.xpose.msra.mxu0 0.0
    %461 = vmatpush.xpose.msra.mxu0 0.0
    %462 = vmatpush.xpose.msra.mxu0 0.0
    %463 = vmatpush.xpose.msra.mxu0 0.0
    %464 = vmatpush.xpose.msra.mxu0 0.0
    %465 = vmatpush.xpose.msra.mxu0 0.0
    %466 = vmatpush.xpose.msra.mxu0 0.0
    %467 = vmatpush.xpose.msra.mxu0 0.0
    %468 = vmatpush.xpose.msra.mxu0 0.0
    %469 = vmatpush.xpose.msra.mxu0 0.0
    %470 = vmatpush.xpose.msra.mxu0 0.0
    %471 = vmatpush.xpose.msra.mxu0 0.0
    %472 = vmatpush.xpose.msra.mxu0 0.0
    %473 = vmatpush.xpose.msra.mxu0 0.0
    %474 = vmatpush.xpose.msra.mxu0 0.0
    %475 = vmatpush.xpose.msra.mxu0 %v332
    %476 = vmatmul.f32.gmra.mxu0 %v458
    %v477 = vpop.f32.mrf.mxu0
    %v478 = vadd.f32 0.0, %v477
    %479 = vdwg.mxu0
    %v480 = vsel %vm354, %v455, -inf
    %481 = vmax.xlane.f32.xlu0 %v480
    %v482 = vpop.xlane.xlu0 %481
    %v483 = vsel %vm354, %v478, -inf
    %484 = vmax.xlane.f32.xlu0 %v483
    %v485 = vpop.xlane.xlu0 %484
    %v486 = vsub.f32 %v455, %v482
    %v487 = vsub.f32 %v478, %v485
    %v488 = vmul.f32 %v486, 1.442695
    %v489 = vpow.pop %v488
    %v490 = vmul.f32 %v487, 1.442695
    %v491 = vpow.pop %v490
    %v492 = vsel %vm354, %v489, 0.0
    %493 = vadd.xlane.f32.xlu0 %v492
    %v494 = vpop.xlane.xlu0 %493
    %v495 = vsel %vm354, %v491, 0.0
    %496 = vadd.xlane.f32.xlu0 %v495
    %v497 = vpop.xlane.xlu0 %496
    %v498 = vrcp.pop %v494
    %v499 = vrcp.pop %v497
    %v500 = vmul.f32 %v489, %v498
    %v501 = vmul.f32 %v491, %v499
    %v503 = vsel %vm354, %v500, 0
    %505 = vmatpush.msra.mxu0 0.0
    %506 = vmatpush.msra.mxu0 0.0
    %507 = vmatpush.msra.mxu0 0.0
    %508 = vmatpush.msra.mxu0 0.0
    %509 = vmatpush.msra.mxu0 0.0
    %510 = vmatpush.msra.mxu0 0.0
    %511 = vmatpush.msra.mxu0 0.0
    %512 = vmatpush.msra.mxu0 0.0
    %513 = vmatpush.msra.mxu0 0.0
    %514 = vmatpush.msra.mxu0 0.0
    %515 = vmatpush.msra.mxu0 0.0
    %516 = vmatpush.msra.mxu0 0.0
    %517 = vmatpush.msra.mxu0 0.0
    %518 = vmatpush.msra.mxu0 0.0
    %519 = vmatpush.msra.mxu0 0.0
    %520 = vmatpush.msra.mxu0 %v432
    %521 = vmatmul.f32.gmra.mxu0 %v503
    %v522 = vpop.f32.mrf.mxu0
    %v523 = vadd.f32 0.0, %v522
    %524 = vdwg.mxu0
    %v526 = vsel %vm354, %v501, 0
    %528 = vmatpush.msra.mxu0 0.0
    %529 = vmatpush.msra.mxu0 0.0
    %530 = vmatpush.msra.mxu0 0.0
    %531 = vmatpush.msra.mxu0 0.0
    %532 = vmatpush.msra.mxu0 0.0
    %533 = vmatpush.msra.mxu0 0.0
    %534 = vmatpush.msra.mxu0 0.0
    %535 = vmatpush.msra.mxu0 0.0
    %536 = vmatpush.msra.mxu0 0.0
    %537 = vmatpush.msra.mxu0 0.0
    %538 = vmatpush.msra.mxu0 0.0
    %539 = vmatpush.msra.mxu0 0.0
    %540 = vmatpush.msra.mxu0 0.0
    %541 = vmatpush.msra.mxu0 0.0
    %542 = vmatpush.msra.mxu0 0.0
    %543 = vmatpush.msra.mxu0 %v433
    %544 = vmatmul.f32.gmra.mxu0 %v526
    %v545 = vpop.f32.mrf.mxu0
    %v546 = vadd.f32 0.0, %v545
    %547 = vdwg.mxu0
    %v548 = vadd.f32 %v423, %v523
    %v549 = vadd.f32 %v424, %v546
    %s550 = scalar_lea.vmem [#allocation7], 2
    %v551 = vld [vmem:[%s550] sm:$0x1]
    %v553 = vperm.slane %v551, 0
    %v555 = vmul.f32 %v224, %v553
    %v556 = vmul.f32 %v225, %v553
    %v557 = vmul.f32 %v289, %v553
    %v558 = vmul.f32 %v292, %v553
    %v560 = vsel %vm194, %v555, 0
    %562 = vmatpush.xpose.msra.mxu0 0.0
    %563 = vmatpush.xpose.msra.mxu0 0.0
    %564 = vmatpush.xpose.msra.mxu0 0.0
    %565 = vmatpush.xpose.msra.mxu0 0.0
    %566 = vmatpush.xpose.msra.mxu0 0.0
    %567 = vmatpush.xpose.msra.mxu0 0.0
    %568 = vmatpush.xpose.msra.mxu0 0.0
    %569 = vmatpush.xpose.msra.mxu0 0.0
    %570 = vmatpush.xpose.msra.mxu0 0.0
    %571 = vmatpush.xpose.msra.mxu0 0.0
    %572 = vmatpush.xpose.msra.mxu0 0.0
    %573 = vmatpush.xpose.msra.mxu0 0.0
    %574 = vmatpush.xpose.msra.mxu0 0.0
    %575 = vmatpush.xpose.msra.mxu0 0.0
    %576 = vmatpush.xpose.msra.mxu0 0.0
    %577 = vmatpush.xpose.msra.mxu0 %v306
    %578 = vmatmul.f32.gmra.mxu0 %v560
    %v579 = vpop.f32.mrf.mxu0
    %v580 = vadd.f32 0.0, %v579
    %581 = vdwg.mxu0
    %v583 = vsel %vm194, %v556, 0
    %585 = vmatpush.xpose.msra.mxu0 0.0
    %586 = vmatpush.xpose.msra.mxu0 0.0
    %587 = vmatpush.xpose.msra.mxu0 0.0
    %588 = vmatpush.xpose.msra.mxu0 0.0
    %589 = vmatpush.xpose.msra.mxu0 0.0
    %590 = vmatpush.xpose.msra.mxu0 0.0
    %591 = vmatpush.xpose.msra.mxu0 0.0
    %592 = vmatpush.xpose.msra.mxu0 0.0
    %593 = vmatpush.xpose.msra.mxu0 0.0
    %594 = vmatpush.xpose.msra.mxu0 0.0
    %595 = vmatpush.xpose.msra.mxu0 0.0
    %596 = vmatpush.xpose.msra.mxu0 0.0
    %597 = vmatpush.xpose.msra.mxu0 0.0
    %598 = vmatpush.xpose.msra.mxu0 0.0
    %599 = vmatpush.xpose.msra.mxu0 0.0
    %600 = vmatpush.xpose.msra.mxu0 %v332
    %601 = vmatmul.f32.gmra.mxu0 %v583
    %v602 = vpop.f32.mrf.mxu0
    %v603 = vadd.f32 0.0, %v602
    %604 = vdwg.mxu0
    %v605 = vsel %vm354, %v580, -inf
    %606 = vmax.xlane.f32.xlu0 %v605
    %v607 = vpop.xlane.xlu0 %606
    %v608 = vsel %vm354, %v603, -inf
    %609 = vmax.xlane.f32.xlu0 %v608
    %v610 = vpop.xlane.xlu0 %609
    %v611 = vsub.f32 %v580, %v607
    %v612 = vsub.f32 %v603, %v610
    %v613 = vmul.f32 %v611, 1.442695
    %v614 = vpow.pop %v613
    %v615 = vmul.f32 %v612, 1.442695
    %v616 = vpow.pop %v615
    %v617 = vsel %vm354, %v614, 0.0
    %618 = vadd.xlane.f32.xlu0 %v617
    %v619 = vpop.xlane.xlu0 %618
    %v620 = vsel %vm354, %v616, 0.0
    %621 = vadd.xlane.f32.xlu0 %v620
    %v622 = vpop.xlane.xlu0 %621
    %v623 = vrcp.pop %v619
    %v624 = vrcp.pop %v622
    %v625 = vmul.f32 %v614, %v623
    %v626 = vmul.f32 %v616, %v624
    %v628 = vsel %vm354, %v625, 0
    %630 = vmatpush.msra.mxu0 0.0
    %631 = vmatpush.msra.mxu0 0.0
    %632 = vmatpush.msra.mxu0 0.0
    %633 = vmatpush.msra.mxu0 0.0
    %634 = vmatpush.msra.mxu0 0.0
    %635 = vmatpush.msra.mxu0 0.0
    %636 = vmatpush.msra.mxu0 0.0
    %637 = vmatpush.msra.mxu0 0.0
    %638 = vmatpush.msra.mxu0 0.0
    %639 = vmatpush.msra.mxu0 0.0
    %640 = vmatpush.msra.mxu0 0.0
    %641 = vmatpush.msra.mxu0 0.0
    %642 = vmatpush.msra.mxu0 0.0
    %643 = vmatpush.msra.mxu0 0.0
    %644 = vmatpush.msra.mxu0 0.0
    %645 = vmatpush.msra.mxu0 %v557
    %646 = vmatmul.f32.gmra.mxu0 %v628
    %v647 = vpop.f32.mrf.mxu0
    %v648 = vadd.f32 0.0, %v647
    %649 = vdwg.mxu0
    %v651 = vsel %vm354, %v626, 0
    %653 = vmatpush.msra.mxu0 0.0
    %654 = vmatpush.msra.mxu0 0.0
    %655 = vmatpush.msra.mxu0 0.0
    %656 = vmatpush.msra.mxu0 0.0
    %657 = vmatpush.msra.mxu0 0.0
    %658 = vmatpush.msra.mxu0 0.0
    %659 = vmatpush.msra.mxu0 0.0
    %660 = vmatpush.msra.mxu0 0.0
    %661 = vmatpush.msra.mxu0 0.0
    %662 = vmatpush.msra.mxu0 0.0
    %663 = vmatpush.msra.mxu0 0.0
    %664 = vmatpush.msra.mxu0 0.0
    %665 = vmatpush.msra.mxu0 0.0
    %666 = vmatpush.msra.mxu0 0.0
    %667 = vmatpush.msra.mxu0 0.0
    %668 = vmatpush.msra.mxu0 %v558
    %669 = vmatmul.f32.gmra.mxu0 %v651
    %v670 = vpop.f32.mrf.mxu0
    %v671 = vadd.f32 0.0, %v670
    %672 = vdwg.mxu0
    %v673 = vadd.f32 %v548, %v648
    %v674 = vadd.f32 %v549, %v671
    %s675 = scalar_lea.vmem [#allocation7], 3
    %v676 = vld [vmem:[%s675] sm:$0x1]
    %v678 = vperm.slane %v676, 0
    %v680 = vmul.f32 %v224, %v678
    %v681 = vmul.f32 %v225, %v678
    %v682 = vmul.f32 %v289, %v678
    %v683 = vmul.f32 %v292, %v678
    %v685 = vsel %vm194, %v680, 0
    %687 = vmatpush.xpose.msra.mxu0 0.0
    %688 = vmatpush.xpose.msra.mxu0 0.0
    %689 = vmatpush.xpose.msra.mxu0 0.0
    %690 = vmatpush.xpose.msra.mxu0 0.0
    %691 = vmatpush.xpose.msra.mxu0 0.0
    %692 = vmatpush.xpose.msra.mxu0 0.0
    %693 = vmatpush.xpose.msra.mxu0 0.0
    %694 = vmatpush.xpose.msra.mxu0 0.0
    %695 = vmatpush.xpose.msra.mxu0 0.0
    %696 = vmatpush.xpose.msra.mxu0 0.0
    %697 = vmatpush.xpose.msra.mxu0 0.0
    %698 = vmatpush.xpose.msra.mxu0 0.0
    %699 = vmatpush.xpose.msra.mxu0 0.0
    %700 = vmatpush.xpose.msra.mxu0 0.0
    %701 = vmatpush.xpose.msra.mxu0 0.0
    %702 = vmatpush.xpose.msra.mxu0 %v306
    %703 = vmatmul.f32.gmra.mxu0 %v685
    %v704 = vpop.f32.mrf.mxu0
    %v705 = vadd.f32 0.0, %v704
    %706 = vdwg.mxu0
    %v708 = vsel %vm194, %v681, 0
    %710 = vmatpush.xpose.msra.mxu0 0.0
    %711 = vmatpush.xpose.msra.mxu0 0.0
    %712 = vmatpush.xpose.msra.mxu0 0.0
    %713 = vmatpush.xpose.msra.mxu0 0.0
    %714 = vmatpush.xpose.msra.mxu0 0.0
    %715 = vmatpush.xpose.msra.mxu0 0.0
    %716 = vmatpush.xpose.msra.mxu0 0.0
    %717 = vmatpush.xpose.msra.mxu0 0.0
    %718 = vmatpush.xpose.msra.mxu0 0.0
    %719 = vmatpush.xpose.msra.mxu0 0.0
    %720 = vmatpush.xpose.msra.mxu0 0.0
    %721 = vmatpush.xpose.msra.mxu0 0.0
    %722 = vmatpush.xpose.msra.mxu0 0.0
    %723 = vmatpush.xpose.msra.mxu0 0.0
    %724 = vmatpush.xpose.msra.mxu0 0.0
    %725 = vmatpush.xpose.msra.mxu0 %v332
    %726 = vmatmul.f32.gmra.mxu0 %v708
    %v727 = vpop.f32.mrf.mxu0
    %v728 = vadd.f32 0.0, %v727
    %729 = vdwg.mxu0
    %v730 = vsel %vm354, %v705, -inf
    %731 = vmax.xlane.f32.xlu0 %v730
    %v732 = vpop.xlane.xlu0 %731
    %v733 = vsel %vm354, %v728, -inf
    %734 = vmax.xlane.f32.xlu0 %v733
    %v735 = vpop.xlane.xlu0 %734
    %v736 = vsub.f32 %v705, %v732
    %v737 = vsub.f32 %v728, %v735
    %v738 = vmul.f32 %v736, 1.442695
    %v739 = vpow.pop %v738
    %v740 = vmul.f32 %v737, 1.442695
    %v741 = vpow.pop %v740
    %v742 = vsel %vm354, %v739, 0.0
    %743 = vadd.xlane.f32.xlu0 %v742
    %v744 = vpop.xlane.xlu0 %743
    %v745 = vsel %vm354, %v741, 0.0
    %746 = vadd.xlane.f32.xlu0 %v745
    %v747 = vpop.xlane.xlu0 %746
    %v748 = vrcp.pop %v744
    %v749 = vrcp.pop %v747
    %v750 = vmul.f32 %v739, %v748
    %v751 = vmul.f32 %v741, %v749
    %v753 = vsel %vm354, %v750, 0
    %755 = vmatpush.msra.mxu0 0.0
    %756 = vmatpush.msra.mxu0 0.0
    %757 = vmatpush.msra.mxu0 0.0
    %758 = vmatpush.msra.mxu0 0.0
    %759 = vmatpush.msra.mxu0 0.0
    %760 = vmatpush.msra.mxu0 0.0
    %761 = vmatpush.msra.mxu0 0.0
    %762 = vmatpush.msra.mxu0 0.0
    %763 = vmatpush.msra.mxu0 0.0
    %764 = vmatpush.msra.mxu0 0.0
    %765 = vmatpush.msra.mxu0 0.0
    %766 = vmatpush.msra.mxu0 0.0
    %767 = vmatpush.msra.mxu0 0.0
    %768 = vmatpush.msra.mxu0 0.0
    %769 = vmatpush.msra.mxu0 0.0
    %770 = vmatpush.msra.mxu0 %v682
    %771 = vmatmul.f32.gmra.mxu0 %v753
    %v772 = vpop.f32.mrf.mxu0
    %v773 = vadd.f32 0.0, %v772
    %774 = vdwg.mxu0
    %v776 = vsel %vm354, %v751, 0
    %778 = vmatpush.msra.mxu0 0.0
    %779 = vmatpush.msra.mxu0 0.0
    %780 = vmatpush.msra.mxu0 0.0
    %781 = vmatpush.msra.mxu0 0.0
    %782 = vmatpush.msra.mxu0 0.0
    %783 = vmatpush.msra.mxu0 0.0
    %784 = vmatpush.msra.mxu0 0.0
    %785 = vmatpush.msra.mxu0 0.0
    %786 = vmatpush.msra.mxu0 0.0
    %787 = vmatpush.msra.mxu0 0.0
    %788 = vmatpush.msra.mxu0 0.0
    %789 = vmatpush.msra.mxu0 0.0
    %790 = vmatpush.msra.mxu0 0.0
    %791 = vmatpush.msra.mxu0 0.0
    %792 = vmatpush.msra.mxu0 0.0
    %793 = vmatpush.msra.mxu0 %v683
    %794 = vmatmul.f32.gmra.mxu0 %v776
    %v795 = vpop.f32.mrf.mxu0
    %v796 = vadd.f32 0.0, %v795
    %797 = vdwg.mxu0
    %v798 = vadd.f32 %v673, %v773
    %v799 = vadd.f32 %v674, %v796
    %v800 = vld [vmem:[#allocation13] sm:$0xff]
    %v801 = vld [vmem:[#allocation13 + $0x8] sm:$0xff]
    %v802 = vld [vmem:[#allocation13 + $0x10] sm:$0xff]
    %v803 = vld [vmem:[#allocation13 + $0x18] sm:$0xff]
    %v804 = vld [vmem:[%s10] sm:$0x1]
    %v806 = vperm.slane %v804, 0
    %v809 = vsel %vm194, %v798, 0
    %v812 = vsel %vm194, %v799, 0
    %814 = vmatpush.msra.mxu0 0.0
    %815 = vmatpush.msra.mxu0 0.0
    %816 = vmatpush.msra.mxu0 0.0
    %817 = vmatpush.msra.mxu0 0.0
    %818 = vmatpush.msra.mxu0 0.0
    %819 = vmatpush.msra.mxu0 0.0
    %820 = vmatpush.msra.mxu0 0.0
    %821 = vmatpush.msra.mxu0 0.0
    %822 = vmatpush.msra.mxu0 0.0
    %823 = vmatpush.msra.mxu0 0.0
    %824 = vmatpush.msra.mxu0 0.0
    %825 = vmatpush.msra.mxu0 0.0
    %826 = vmatpush.msra.mxu0 %v803
    %827 = vmatpush.msra.mxu0 %v802
    %828 = vmatpush.msra.mxu0 %v801
    %829 = vmatpush.msra.mxu0 %v800
    %830 = vmatmul.f32.gmra.mxu0 %v809
    %v831 = vpop.f32.mrf.mxu0
    %v832 = vadd.f32 %v806, %v831
    %833 = vmatmul.f32.gmra.mxu0 %v812
    %v834 = vpop.f32.mrf.mxu0
    %v835 = vadd.f32 %v806, %v834
    %836 = vdwg.mxu0
    %v837 = vadd.f32 %v832, %v182
    %v838 = vadd.f32 %v835, %v183
    %v839 = vld [vmem:[%s11] sm:$0x1]
    %v840 = vld [vmem:[%s12] sm:$0x1]
    %v841 = vsel %vm194, %v837, 0.0
    %842 = vadd.xlane.f32.xlu0 %v841
    %v843 = vpop.xlane.xlu0 %842
    %v844 = vsel %vm194, %v838, 0.0
    %845 = vadd.xlane.f32.xlu0 %v844
    %v846 = vpop.xlane.xlu0 %845
    %v847 = vrcp.pop 32.0
    %v848 = vmul.f32 32.0, %v847
    %v849 = vsub.f32 1.0, %v848
    %v850 = vmul.f32 %v847, %v849
    %v851 = vadd.f32 %v847, %v850
    %vm852 = vweird.f32 %v847
    %v853 = vsel %vm852, %v847, %v851
    %v854 = vmul.f32 %v843, %v853
    %v855 = vmul.f32 %v846, %v853
    %v856 = vsub.f32 %v837, %v854
    %v857 = vsub.f32 %v838, %v855
    %v858 = vmul.f32 %v856, %v856
    %v859 = vmul.f32 %v857, %v857
    %v860 = vsel %vm194, %v858, 0.0
    %861 = vadd.xlane.f32.xlu0 %v860
    %v862 = vpop.xlane.xlu0 %861
    %v863 = vsel %vm194, %v859, 0.0
    %864 = vadd.xlane.f32.xlu0 %v863
    %v865 = vpop.xlane.xlu0 %864
    %v866 = vmul.f32 %v862, %v853
    %v867 = vmul.f32 %v865, %v853
    %v868 = vadd.f32 %v866, 1e-05
    %v869 = vadd.f32 %v867, 1e-05
    %v870 = vrsqrt.pop %v868
    %v871 = vmul.f32 %v870, %v868
    %v872 = vmul.f32 %v871, %v870
    %v873 = vmul.f32 0.5, %v872
    %v874 = vsub.f32 1.5, %v873
    %v875 = vmul.f32 %v870, %v874
    %vm876 = vweird.f32 %v868
    %vm877 = vweird.f32 %v870
    %vm878 = vmor %vm876, %vm877
    %v879 = vsel %vm878, %v870, %v875
    %v880 = vrsqrt.pop %v869
    %v881 = vmul.f32 %v880, %v869
    %v882 = vmul.f32 %v881, %v880
    %v883 = vmul.f32 0.5, %v882
    %v884 = vsub.f32 1.5, %v883
    %v885 = vmul.f32 %v880, %v884
    %vm886 = vweird.f32 %v869
    %vm887 = vweird.f32 %v880
    %vm888 = vmor %vm886, %vm887
    %v889 = vsel %vm888, %v880, %v885
    %v890 = vmul.f32 %v856, %v879
    %v891 = vmul.f32 %v857, %v889
    %v893 = vperm.slane %v839, 0
    %v895 = vmul.f32 %v890, %v893
    %v896 = vmul.f32 %v891, %v893
    %v898 = vperm.slane %v840, 0
    %v900 = vadd.f32 %v895, %v898
    %v901 = vadd.f32 %v896, %v898
    %v902 = vld [vmem:[#allocation14] sm:$0xff]
    %v903 = vld [vmem:[#allocation14 + $0x8] sm:$0xff]
    %v904 = vld [vmem:[#allocation14 + $0x10] sm:$0xff]
    %v905 = vld [vmem:[#allocation14 + $0x18] sm:$0xff]
    %v906 = vld [vmem:[%s14] sm:$0x1]
    %v908 = vperm.slane %v906, 0
    %v911 = vsel %vm194, %v900, 0
    %v914 = vsel %vm194, %v901, 0
    %916 = vmatpush.msra.mxu0 0.0
    %917 = vmatpush.msra.mxu0 0.0
    %918 = vmatpush.msra.mxu0 0.0
    %919 = vmatpush.msra.mxu0 0.0
    %920 = vmatpush.msra.mxu0 0.0
    %921 = vmatpush.msra.mxu0 0.0
    %922 = vmatpush.msra.mxu0 0.0
    %923 = vmatpush.msra.mxu0 0.0
    %924 = vmatpush.msra.mxu0 0.0
    %925 = vmatpush.msra.mxu0 0.0
    %926 = vmatpush.msra.mxu0 0.0
    %927 = vmatpush.msra.mxu0 0.0
    %928 = vmatpush.msra.mxu0 %v905
    %929 = vmatpush.msra.mxu0 %v904
    %930 = vmatpush.msra.mxu0 %v903
    %931 = vmatpush.msra.mxu0 %v902
    %932 = vmatmul.f32.gmra.mxu0 %v911
    %v933 = vpop.f32.mrf.mxu0
    %v934 = vadd.f32 %v908, %v933
    %935 = vmatmul.f32.gmra.mxu0 %v914
    %v936 = vpop.f32.mrf.mxu0
    %v937 = vadd.f32 %v908, %v936
    %938 = vdwg.mxu0
    %v939 = vmax.f32 %v934, 0.0
    %v940 = vmax.f32 %v937, 0.0
    %v941 = vadd.f32 %v900, %v939
    %v942 = vadd.f32 %v901, %v940
    %v943 = vld [vmem:[%s15] sm:$0x1]
    %v944 = vld [vmem:[%s16] sm:$0x1]
    %v945 = vsel %vm194, %v941, 0.0
    %946 = vadd.xlane.f32.xlu0 %v945
    %v947 = vpop.xlane.xlu0 %946
    %v948 = vsel %vm194, %v942, 0.0
    %949 = vadd.xlane.f32.xlu0 %v948
    %v950 = vpop.xlane.xlu0 %949
    %v951 = vmul.f32 %v947, %v853
    %v952 = vmul.f32 %v950, %v853
    %v953 = vsub.f32 %v941, %v951
    %v954 = vsub.f32 %v942, %v952
    %v955 = vmul.f32 %v953, %v953
    %v956 = vmul.f32 %v954, %v954
    %v957 = vsel %vm194, %v955, 0.0
    %958 = vadd.xlane.f32.xlu0 %v957
    %v959 = vpop.xlane.xlu0 %958
    %v960 = vsel %vm194, %v956, 0.0
    %961 = vadd.xlane.f32.xlu0 %v960
    %v962 = vpop.xlane.xlu0 %961
    %v963 = vmul.f32 %v959, %v853
    %v964 = vmul.f32 %v962, %v853
    %v965 = vadd.f32 %v963, 1e-05
    %v966 = vadd.f32 %v964, 1e-05
    %v967 = vrsqrt.pop %v965
    %v968 = vmul.f32 %v967, %v965
    %v969 = vmul.f32 %v968, %v967
    %v970 = vmul.f32 0.5, %v969
    %v971 = vsub.f32 1.5, %v970
    %v972 = vmul.f32 %v967, %v971
    %vm973 = vweird.f32 %v965
    %vm974 = vweird.f32 %v967
    %vm975 = vmor %vm973, %vm974
    %v976 = vsel %vm975, %v967, %v972
    %v977 = vrsqrt.pop %v966
    %v978 = vmul.f32 %v977, %v966
    %v979 = vmul.f32 %v978, %v977
    %v980 = vmul.f32 0.5, %v979
    %v981 = vsub.f32 1.5, %v980
    %v982 = vmul.f32 %v977, %v981
    %vm983 = vweird.f32 %v966
    %vm984 = vweird.f32 %v977
    %vm985 = vmor %vm983, %vm984
    %v986 = vsel %vm985, %v977, %v982
    %v987 = vmul.f32 %v953, %v976
    %v988 = vmul.f32 %v954, %v986
    %v990 = vperm.slane %v943, 0
    %v992 = vmul.f32 %v987, %v990
    %v993 = vmul.f32 %v988, %v990
    %v995 = vperm.slane %v944, 0
    %v997 = vadd.f32 %v992, %v995
    %v998 = vadd.f32 %v993, %v995
    %999 = vst.msk [vmem:[#allocation16] sm:$0xff] %vm194, %v997
    %1000 = vst.msk [vmem:[#allocation16 + $0x8] sm:$0xff] %vm194, %v998
    // Predicated region
    $region102: #{tpu_custom_call.1} parent=1 // pred_check
      _
    $region103: #{tpu_custom_call.1} parent=1 // pred_check_branch
      %1002 = sbr.rel (0) target = $region105
    $region104: #{tpu_custom_call.1} parent=1 // pred_region
      %1004 = vsyncadd [#allocation4], 0
      %s1005 = sshll.u32 [#allocation16], 4
      %s1006 = int_to_ptr.vmem [resolvable:$true] %s1005
      %s1007 = sshll.u32 %s17, 4
      %s1008 = int_to_ptr.hbm [resolvable:$true] %s1007
      %1013 = dma.vmem_to_hbm [thread:$0]  %s1006, 256, %s1008, [#allocation4], 128, 128, 8
    $region105: #{tpu_custom_call.1} parent=1 // pred_fallthru
      _
    // Predicated region
    $region106: #{tpu_custom_call.1} parent=1 // pred_check
      _
    $region107: #{tpu_custom_call.1} parent=1 // pred_check_branch
      %1015 = sbr.rel (0) target = $region109
    $region108: #{tpu_custom_call.1} parent=1 // pred_region
      %1017 = dma.done [#allocation4], 256
    $region109: #{tpu_custom_call.1} parent=1 // pred_fallthru
      _
    %1018 = vsyncpa [#allocation3], 1
    %1019 = vsyncpa [#allocation6], 1
    %1020 = vsyncpa [#allocation9], 1
    %1021 = vsyncpa [#allocation12], 1
    %1022 = vsyncpa [#allocation15], 1
    %1023 = vsyncpa [#allocation4], 1

</llo_original>
